<compile_context>
chip_gen: v5e
topology: v5e:2x2
jax: 0.10.0
libtpu: 0.0.40
codegen_flags: <defaults>
</compile_context>

<pallas_src>
import functools

import jax
import jax.numpy as jnp
from jax.experimental import pallas as pl
from jax.experimental.pallas import tpu as pltpu


def _value_mlp_kernel(x_ref, w1_ref, b1_ref, w2_ref, b2_ref, w3t_ref, b3_ref,
                      o_ref):
    x = x_ref[...]                     # (3, TB) f32, batch on lanes
    w1 = w1_ref[...]                   # (32, 3) f32

    # --- Layer 1: K=3 contraction on the VPU (broadcast multiply-adds).
    h1 = (w1[:, 0:1] * x[0:1, :]
          + w1[:, 1:2] * x[1:2, :]
          + w1[:, 2:3] * x[2:3, :]
          + b1_ref[...])               # (32, TB) f32
    h1 = jnp.maximum(h1, 0.0)

    # --- Layer 2: MXU matmul in bf16, accumulate in f32.
    h2 = jnp.dot(w2_ref[...], h1.astype(jnp.bfloat16),
                 preferred_element_type=jnp.float32) + b2_ref[...]   # (32, TB)
    h2 = jnp.maximum(h2, 0.0)

    # --- Layer 3: out_features=1 -> f32 multiply + sublane reduce (XLU).
    o_ref[...] = (jnp.sum(w3t_ref[...] * h2, axis=0, keepdims=True)
                  + b3_ref[...])       # (1, TB), lane-dense store


def _mlp_reference(x, p):
    """Pure-JAX reference, identical semantics to the torch module (f32)."""
    h1 = jnp.maximum(x @ p["w1"].T + p["b1"], 0.0)
    h2 = jnp.maximum(h1 @ p["w2"].T + p["b2"], 0.0)
    return h2 @ p["w3"].T + p["b3"]


def _round_up(n, m):
    return (n + m - 1) // m * m


@functools.partial(jax.jit, static_argnames=("tile_b", "min_pallas_batch"))
def value_forward(x, params, *, tile_b=2048, min_pallas_batch=64):
    """x: (B, 3). Returns (B, 1) float32, matching nn.Linear (y = x @ W^T + b)."""
    x = jnp.asarray(x, dtype=jnp.float32)
    B = x.shape[0]

    # Tiny batches: kernel launch/grid overhead dominates -> fused XLA path.
    if B < min_pallas_batch:
        return _mlp_reference(x, params)

    # Batch tile: multiple of 128 lanes; tiny VMEM footprint on every chip.
    tb = min(tile_b, _round_up(B, 128))
    Bp = _round_up(B, tb)

    # Transpose so batch is the lane dimension; zero-pad the remainder tile.
    xt = jnp.pad(x.T, ((0, 0), (0, Bp - B)))            # (3, Bp) f32

    w1 = params["w1"].astype(jnp.float32)                # (32, 3)  f32
    b1 = params["b1"].reshape(-1, 1).astype(jnp.float32) # (32, 1)  f32
    w2 = params["w2"].astype(jnp.bfloat16)               # (32, 32) bf16 (MXU)
    b2 = params["b2"].reshape(-1, 1).astype(jnp.float32) # (32, 1)  f32
    w3t = params["w3"].T.astype(jnp.float32)             # (32, 1)  f32
    b3 = params["b3"].reshape(1, 1).astype(jnp.float32)  # (1, 1)   f32

    const = lambda a: pl.BlockSpec(a.shape, lambda i: (0, 0))

    out_t = pl.pallas_call(
        _value_mlp_kernel,
        out_shape=jax.ShapeDtypeStruct((1, Bp), jnp.float32),
        grid=(Bp // tb,),
        in_specs=[
            pl.BlockSpec((3, tb), lambda i: (0, i)),     # x tile, pipelined
            const(w1), const(b1),                        # VMEM-resident weights
            const(w2), const(b2),
            const(w3t), const(b3),
        ],
        out_specs=pl.BlockSpec((1, tb), lambda i: (0, i)),
        compiler_params=pltpu.CompilerParams(
            dimension_semantics=("parallel",)),
    )(xt, w1, b1, w2, b2, w3t, b3)

    return out_t[:, :B].T                                # (B, 1)


def init_params(key):
    """Deterministic init mirroring torch.nn.Linear defaults U[-1/sqrt(fan_in), +].

    Weights kept in torch orientation (out_features, in_features); biases (out,).
    """
    def linear(key, fan_in, fan_out):
        kw, kb = jax.random.split(key)
        bound = 1.0 / (fan_in ** 0.5)
        w = jax.random.uniform(kw, (fan_out, fan_in), jnp.float32,
                               minval=-bound, maxval=bound)
        b = jax.random.uniform(kb, (fan_out,), jnp.float32,
                               minval=-bound, maxval=bound)
        return w, b

    k1, k2, k3 = jax.random.split(key, 3)
    w1, b1 = linear(k1, 3, 32)
    w2, b2 = linear(k2, 32, 32)
    w3, b3 = linear(k3, 32, 1)
    return dict(w1=w1, b1=b1, w2=w2, b2=b2, w3=w3, b3=b3)


if __name__ == "__main__":
    key = jax.random.PRNGKey(0)
    kx1, kx2, kp = jax.random.split(key, 3)
    params = init_params(kp)

    # Batch large enough to dispatch the Pallas kernel; 300 % 128 != 0 so the
    # remainder-tile (zero-pad) path is exercised too.
    xb = jax.random.normal(kx1, (300, 3), dtype=jnp.float32)
    out = jax.block_until_ready(value_forward(xb, params))
    ref = _mlp_reference(xb, params)
    assert out.shape == (300, 1), out.shape
    # Layer 2 runs in bf16 on the MXU -> loosened tolerance vs the f32 reference.
    assert jnp.allclose(out, ref, atol=5e-2, rtol=5e-2), "mismatch vs reference"

    # Tiny batch (like the original B=8 usage) takes the fused-XLA fallback.
    xs = jax.random.normal(kx2, (8, 3), dtype=jnp.float32)
    outs = jax.block_until_ready(value_forward(xs, params))
    assert outs.shape == (8, 1), outs.shape
    assert jnp.allclose(outs, _mlp_reference(xs, params), atol=1e-5, rtol=1e-5)

    print("KERNEL_OK")
</pallas_src>

<mosaic_0001>
module attributes {stable_mosaic.version = 11 : i64} {
  func.func @_value_mlp_kernel(%arg0: i32, %arg1: memref<3x384xf32, #tpu.memory_space<vmem>>, %arg2: memref<32x3xf32, #tpu.memory_space<vmem>>, %arg3: memref<32x1xf32, #tpu.memory_space<vmem>>, %arg4: memref<32x32xbf16, #tpu.memory_space<vmem>>, %arg5: memref<32x1xf32, #tpu.memory_space<vmem>>, %arg6: memref<32x1xf32, #tpu.memory_space<vmem>>, %arg7: memref<1x1xf32, #tpu.memory_space<vmem>>, %arg8: memref<1x384xf32, #tpu.memory_space<vmem>>) attributes {dimension_semantics = [#tpu.dimension_semantics<parallel>], iteration_bounds = array<i64: 1>, scalar_prefetch = 0 : i64, scratch_operands = 0 : i64, tpu.core_type = #tpu.core_type<tc>, window_params = [{transform_indices = @transform_0, window_bounds = array<i64: 3, 384>}, {pipeline_mode = #tpu.pipeline_mode<synchronous>, transform_indices = @transform_1, window_bounds = array<i64: 32, 3>}, {pipeline_mode = #tpu.pipeline_mode<synchronous>, transform_indices = @transform_2, window_bounds = array<i64: 32, 1>}, {pipeline_mode = #tpu.pipeline_mode<synchronous>, transform_indices = @transform_3, window_bounds = array<i64: 32, 32>}, {pipeline_mode = #tpu.pipeline_mode<synchronous>, transform_indices = @transform_4, window_bounds = array<i64: 32, 1>}, {pipeline_mode = #tpu.pipeline_mode<synchronous>, transform_indices = @transform_5, window_bounds = array<i64: 32, 1>}, {pipeline_mode = #tpu.pipeline_mode<synchronous>, transform_indices = @transform_6, window_bounds = array<i64: 1, 1>}, {transform_indices = @transform_7, window_bounds = array<i64: 1, 384>}]} {
    %c0 = arith.constant 0 : index
    %c0_0 = arith.constant 0 : index
    %0 = vector.load %arg1[%c0, %c0_0] : memref<3x384xf32, #tpu.memory_space<vmem>>, vector<3x384xf32>
    %c0_1 = arith.constant 0 : index
    %c0_2 = arith.constant 0 : index
    %1 = vector.load %arg2[%c0_1, %c0_2] : memref<32x3xf32, #tpu.memory_space<vmem>>, vector<32x3xf32>
    %2 = vector.extract_strided_slice %1 {offsets = [0, 0], sizes = [32, 1], strides = [1, 1]} : vector<32x3xf32> to vector<32x1xf32>
    %3 = vector.extract_strided_slice %0 {offsets = [0, 0], sizes = [1, 384], strides = [1, 1]} : vector<3x384xf32> to vector<1x384xf32>
    %4 = vector.broadcast %2 : vector<32x1xf32> to vector<32x384xf32>
    %5 = vector.broadcast %3 : vector<1x384xf32> to vector<32x384xf32>
    %6 = arith.mulf %4, %5 : vector<32x384xf32>
    %7 = vector.extract_strided_slice %1 {offsets = [0, 1], sizes = [32, 1], strides = [1, 1]} : vector<32x3xf32> to vector<32x1xf32>
    %8 = vector.extract_strided_slice %0 {offsets = [1, 0], sizes = [1, 384], strides = [1, 1]} : vector<3x384xf32> to vector<1x384xf32>
    %9 = vector.broadcast %7 : vector<32x1xf32> to vector<32x384xf32>
    %10 = vector.broadcast %8 : vector<1x384xf32> to vector<32x384xf32>
    %11 = arith.mulf %9, %10 : vector<32x384xf32>
    %12 = arith.addf %6, %11 : vector<32x384xf32>
    %13 = vector.extract_strided_slice %1 {offsets = [0, 2], sizes = [32, 1], strides = [1, 1]} : vector<32x3xf32> to vector<32x1xf32>
    %14 = vector.extract_strided_slice %0 {offsets = [2, 0], sizes = [1, 384], strides = [1, 1]} : vector<3x384xf32> to vector<1x384xf32>
    %15 = vector.broadcast %13 : vector<32x1xf32> to vector<32x384xf32>
    %16 = vector.broadcast %14 : vector<1x384xf32> to vector<32x384xf32>
    %17 = arith.mulf %15, %16 : vector<32x384xf32>
    %18 = arith.addf %12, %17 : vector<32x384xf32>
    %c0_3 = arith.constant 0 : index
    %c0_4 = arith.constant 0 : index
    %19 = vector.load %arg3[%c0_3, %c0_4] : memref<32x1xf32, #tpu.memory_space<vmem>>, vector<32x1xf32>
    %20 = vector.broadcast %19 : vector<32x1xf32> to vector<32x384xf32>
    %21 = arith.addf %18, %20 : vector<32x384xf32>
    %cst = arith.constant 0.000000e+00 : f32
    %22 = vector.broadcast %cst : f32 to vector<32x384xf32>
    %23 = arith.maximumf %21, %22 : vector<32x384xf32>
    %c0_5 = arith.constant 0 : index
    %c0_6 = arith.constant 0 : index
    %24 = vector.load %arg4[%c0_5, %c0_6] : memref<32x32xbf16, #tpu.memory_space<vmem>>, vector<32x32xbf16>
    %25 = arith.truncf %23 : vector<32x384xf32> to vector<32x384xbf16>
    %cst_7 = arith.constant dense<0.000000e+00> : vector<32x384xf32>
    %26 = tpu.matmul %24, %25, %cst_7 {dimension_numbers = #tpu.dot_dimension_numbers<[1], [0], [0], [1], [0, 0, 1, 1], [], []>} : vector<32x32xbf16>, vector<32x384xbf16>, vector<32x384xf32> -> vector<32x384xf32>
    %c0_8 = arith.constant 0 : index
    %c0_9 = arith.constant 0 : index
    %27 = vector.load %arg5[%c0_8, %c0_9] : memref<32x1xf32, #tpu.memory_space<vmem>>, vector<32x1xf32>
    %28 = vector.broadcast %27 : vector<32x1xf32> to vector<32x384xf32>
    %29 = arith.addf %26, %28 : vector<32x384xf32>
    %cst_10 = arith.constant 0.000000e+00 : f32
    %30 = vector.broadcast %cst_10 : f32 to vector<32x384xf32>
    %31 = arith.maximumf %29, %30 : vector<32x384xf32>
    %c0_11 = arith.constant 0 : index
    %c0_12 = arith.constant 0 : index
    %32 = vector.load %arg6[%c0_11, %c0_12] : memref<32x1xf32, #tpu.memory_space<vmem>>, vector<32x1xf32>
    %33 = vector.broadcast %32 : vector<32x1xf32> to vector<32x384xf32>
    %34 = arith.mulf %33, %31 : vector<32x384xf32>
    %cst_13 = arith.constant dense<0.000000e+00> : vector<384xf32>
    %35 = vector.multi_reduction <add>, %34, %cst_13 [0] : vector<32x384xf32> to vector<384xf32>
    %36 = vector.shape_cast %35 : vector<384xf32> to vector<1x384xf32>
    %c0_14 = arith.constant 0 : index
    %c0_15 = arith.constant 0 : index
    %37 = vector.load %arg7[%c0_14, %c0_15] : memref<1x1xf32, #tpu.memory_space<vmem>>, vector<1x1xf32>
    %38 = vector.broadcast %37 : vector<1x1xf32> to vector<1x384xf32>
    %39 = arith.addf %36, %38 : vector<1x384xf32>
    %c0_16 = arith.constant 0 : index
    %c0_17 = arith.constant 0 : index
    %40 = vector.load %arg8[%c0_16, %c0_17] : memref<1x384xf32, #tpu.memory_space<vmem>>, vector<1x384xf32>
    tpu.vector_store %arg8[%c0_16, %c0_17], %39 {strides = array<i32>} : memref<1x384xf32, #tpu.memory_space<vmem>>, vector<1x384xf32>,
    return
  }
  func.func @transform_0(%arg0: i32) -> (i32, i32) {
    %c0_i32 = arith.constant 0 : i32
    %c0_i32_0 = arith.constant 0 : i32
    return %c0_i32, %arg0 : i32, i32
  }
  func.func @transform_1(%arg0: i32) -> (i32, i32) {
    %c0_i32 = arith.constant 0 : i32
    %c0_i32_0 = arith.constant 0 : i32
    %c0_i32_1 = arith.constant 0 : i32
    return %c0_i32, %c0_i32_0 : i32, i32
  }
  func.func @transform_2(%arg0: i32) -> (i32, i32) {
    %c0_i32 = arith.constant 0 : i32
    %c0_i32_0 = arith.constant 0 : i32
    %c0_i32_1 = arith.constant 0 : i32
    return %c0_i32, %c0_i32_0 : i32, i32
  }
  func.func @transform_3(%arg0: i32) -> (i32, i32) {
    %c0_i32 = arith.constant 0 : i32
    %c0_i32_0 = arith.constant 0 : i32
    %c0_i32_1 = arith.constant 0 : i32
    return %c0_i32, %c0_i32_0 : i32, i32
  }
  func.func @transform_4(%arg0: i32) -> (i32, i32) {
    %c0_i32 = arith.constant 0 : i32
    %c0_i32_0 = arith.constant 0 : i32
    %c0_i32_1 = arith.constant 0 : i32
    return %c0_i32, %c0_i32_0 : i32, i32
  }
  func.func @transform_5(%arg0: i32) -> (i32, i32) {
    %c0_i32 = arith.constant 0 : i32
    %c0_i32_0 = arith.constant 0 : i32
    %c0_i32_1 = arith.constant 0 : i32
    return %c0_i32, %c0_i32_0 : i32, i32
  }
  func.func @transform_6(%arg0: i32) -> (i32, i32) {
    %c0_i32 = arith.constant 0 : i32
    %c0_i32_0 = arith.constant 0 : i32
    %c0_i32_1 = arith.constant 0 : i32
    return %c0_i32, %c0_i32_0 : i32, i32
  }
  func.func @transform_7(%arg0: i32) -> (i32, i32) {
    %c0_i32 = arith.constant 0 : i32
    %c0_i32_0 = arith.constant 0 : i32
    return %c0_i32, %arg0 : i32, i32
  }
}

</mosaic_0001>

<llo_original>
// kernel: value_forward.1
$region0: #{value_forward.1}
  #allocation0 [shape = 'u32[]', space=smem, size = 0x4, offset = 0x4, fixed_abs, tag = 'smem constant byte address 0x4 - core index']
  #allocation1 [shape = 'u32[72,128]{1,0:T(1,128)}', space=vmem, size = 0x9000, scoped, tag = 'internal scratch']
  #allocation2 [shape = 'f32[1,1]{1,0:T(1,128)S(1)}', space=vmem, size = 0x200, scoped, tag = 'scoped memory for value_forward.1']
  %s0 = inlined_call_operand.vmem [shape: f32[3,384], index: 0, kind: input, shape index: {}]
  %s1 = inlined_call_operand.vmem [shape: f32[32,3], index: 1, kind: input, shape index: {}]
  %s2 = inlined_call_operand.vmem [shape: f32[32,1], index: 2, kind: input, shape index: {}]
  %s3 = inlined_call_operand.vmem [shape: bf16[32,32], index: 3, kind: input, shape index: {}]
  %s4 = inlined_call_operand.vmem [shape: f32[32,1], index: 4, kind: input, shape index: {}]
  %s5 = inlined_call_operand.vmem [shape: f32[32,1], index: 5, kind: input, shape index: {}]
  %s6 = inlined_call_operand.<no memory space> [shape: f32[1,1], index: 6, kind: input, shape index: {}]
  %s7 = inlined_call_operand.vmem [shape: f32[1,384], index: 7, kind: output, shape index: {}]
  %s8 = sld [smem:[#allocation0]]
  $region38: #{value_forward.1} parent=0
    _
  %s10 = ssub.s32 1, %s8
  %s11 = scalar_select 0, %s10, %s8
  %v12 = vstv %s6
  %13 = vst [vmem:[#allocation2] sm:$0x1] %v12
  // Predicated region
  $region2: #{value_forward.1} parent=0 // pred_check
    _
  $region3: #{value_forward.1} parent=0 // pred_check_branch
    %15 = sbr.rel (0) target = $region5
  $region4: #{value_forward.1} parent=0 // pred_region
    _
  $region5: #{value_forward.1} parent=0 // pred_fallthru
    _
  // Predicated region
  $region6: #{value_forward.1} parent=0 // pred_check
    _
  $region7: #{value_forward.1} parent=0 // pred_check_branch
    %17 = sbr.rel (0) target = $region9
  $region8: #{value_forward.1} parent=0 // pred_region
    _
  $region9: #{value_forward.1} parent=0 // pred_fallthru
    _
  // Predicated region
  $region10: #{value_forward.1} parent=0 // pred_check
    _
  $region11: #{value_forward.1} parent=0 // pred_check_branch
    %19 = sbr.rel (0) target = $region13
  $region12: #{value_forward.1} parent=0 // pred_region
    _
  $region13: #{value_forward.1} parent=0 // pred_fallthru
    _
  // Predicated region
  $region14: #{value_forward.1} parent=0 // pred_check
    _
  $region15: #{value_forward.1} parent=0 // pred_check_branch
    %21 = sbr.rel (0) target = $region17
  $region16: #{value_forward.1} parent=0 // pred_region
    _
  $region17: #{value_forward.1} parent=0 // pred_fallthru
    _
  // Predicated region
  $region18: #{value_forward.1} parent=0 // pred_check
    _
  $region19: #{value_forward.1} parent=0 // pred_check_branch
    %23 = sbr.rel (0) target = $region21
  $region20: #{value_forward.1} parent=0 // pred_region
    _
  $region21: #{value_forward.1} parent=0 // pred_fallthru
    _
  // Predicated region
  $region22: #{value_forward.1} parent=0 // pred_check
    _
  $region23: #{value_forward.1} parent=0 // pred_check_branch
    %25 = sbr.rel (0) target = $region25
  $region24: #{value_forward.1} parent=0 // pred_region
    _
  $region25: #{value_forward.1} parent=0 // pred_fallthru
    _
  // Predicated region
  $region26: #{value_forward.1} parent=0 // pred_check
    _
  $region27: #{value_forward.1} parent=0 // pred_check_branch
    %27 = sbr.rel (0) target = $region29
  $region28: #{value_forward.1} parent=0 // pred_region
    _
  $region29: #{value_forward.1} parent=0 // pred_fallthru
    _
  %v29 = vld [vmem:[%s0] sm:$0x77]
  %v30 = vld [vmem:[%s0 + $0x8] sm:$0x7]
  %v31 = vld [vmem:[%s1] sm:$0xff]
  %v32 = vld [vmem:[%s1 + $0x8] sm:$0xff]
  %v33 = vld [vmem:[%s1 + $0x10] sm:$0xff]
  %v34 = vld [vmem:[%s1 + $0x18] sm:$0xff]
  %36 = vset.pattern.permute.xlu0 0
  %37 = vperm.xlu0 %36, %v31
  %v38 = vpop.permute.xlu0 %37
  %41 = vset.pattern.permute.xlu0 0
  %42 = vperm.xlu0 %41, %v32
  %v43 = vpop.permute.xlu0 %42
  %46 = vset.pattern.permute.xlu0 0
  %47 = vperm.xlu0 %46, %v33
  %v48 = vpop.permute.xlu0 %47
  %51 = vset.pattern.permute.xlu0 0
  %52 = vperm.xlu0 %51, %v34
  %v53 = vpop.permute.xlu0 %52
  %v57 = vperm.slane %v29, 0
  %v58 = vperm.slane %v29, 4
  %v59 = vperm.slane %v30, 0
  %v63 = vperm.slane %v57, 0
  %v64 = vperm.slane %v58, 0
  %v65 = vperm.slane %v59, 0
  %v66 = vmul.f32 %v38, %v63
  %v67 = vmul.f32 %v38, %v64
  %v68 = vmul.f32 %v38, %v65
  %v69 = vmul.f32 %v43, %v63
  %v70 = vmul.f32 %v43, %v64
  %v71 = vmul.f32 %v43, %v65
  %v72 = vmul.f32 %v48, %v63
  %v73 = vmul.f32 %v48, %v64
  %v74 = vmul.f32 %v48, %v65
  %v75 = vmul.f32 %v53, %v63
  %v76 = vmul.f32 %v53, %v64
  %v77 = vmul.f32 %v53, %v65
  %78 = vset.pattern.permute.xlu0 1
  %79 = vperm.xlu0 %78, %v31
  %v80 = vpop.permute.xlu0 %79
  %82 = vset.pattern.permute.xlu0 1
  %83 = vperm.xlu0 %82, %v32
  %v84 = vpop.permute.xlu0 %83
  %86 = vset.pattern.permute.xlu0 1
  %87 = vperm.xlu0 %86, %v33
  %v88 = vpop.permute.xlu0 %87
  %90 = vset.pattern.permute.xlu0 1
  %91 = vperm.xlu0 %90, %v34
  %v92 = vpop.permute.xlu0 %91
  %v94 = vperm.slane %v29, 1
  %v95 = vperm.slane %v29, 5
  %v96 = vperm.slane %v30, 1
  %v100 = vperm.slane %v94, 1
  %v101 = vperm.slane %v95, 1
  %v102 = vperm.slane %v96, 1
  %v103 = vmul.f32 %v80, %v100
  %v104 = vmul.f32 %v80, %v101
  %v105 = vmul.f32 %v80, %v102
  %v106 = vmul.f32 %v84, %v100
  %v107 = vmul.f32 %v84, %v101
  %v108 = vmul.f32 %v84, %v102
  %v109 = vmul.f32 %v88, %v100
  %v110 = vmul.f32 %v88, %v101
  %v111 = vmul.f32 %v88, %v102
  %v112 = vmul.f32 %v92, %v100
  %v113 = vmul.f32 %v92, %v101
  %v114 = vmul.f32 %v92, %v102
  %v115 = vadd.f32 %v66, %v103
  %v116 = vadd.f32 %v67, %v104
  %v117 = vadd.f32 %v68, %v105
  %v118 = vadd.f32 %v69, %v106
  %v119 = vadd.f32 %v70, %v107
  %v120 = vadd.f32 %v71, %v108
  %v121 = vadd.f32 %v72, %v109
  %v122 = vadd.f32 %v73, %v110
  %v123 = vadd.f32 %v74, %v111
  %v124 = vadd.f32 %v75, %v112
  %v125 = vadd.f32 %v76, %v113
  %v126 = vadd.f32 %v77, %v114
  %127 = vset.pattern.permute.xlu0 2
  %128 = vperm.xlu0 %127, %v31
  %v129 = vpop.permute.xlu0 %128
  %131 = vset.pattern.permute.xlu0 2
  %132 = vperm.xlu0 %131, %v32
  %v133 = vpop.permute.xlu0 %132
  %135 = vset.pattern.permute.xlu0 2
  %136 = vperm.xlu0 %135, %v33
  %v137 = vpop.permute.xlu0 %136
  %139 = vset.pattern.permute.xlu0 2
  %140 = vperm.xlu0 %139, %v34
  %v141 = vpop.permute.xlu0 %140
  %v143 = vperm.slane %v29, 2
  %v144 = vperm.slane %v29, 6
  %v145 = vperm.slane %v30, 2
  %v149 = vperm.slane %v143, 2
  %v150 = vperm.slane %v144, 2
  %v151 = vperm.slane %v145, 2
  %v152 = vmul.f32 %v129, %v149
  %v153 = vmul.f32 %v129, %v150
  %v154 = vmul.f32 %v129, %v151
  %v155 = vmul.f32 %v133, %v149
  %v156 = vmul.f32 %v133, %v150
  %v157 = vmul.f32 %v133, %v151
  %v158 = vmul.f32 %v137, %v149
  %v159 = vmul.f32 %v137, %v150
  %v160 = vmul.f32 %v137, %v151
  %v161 = vmul.f32 %v141, %v149
  %v162 = vmul.f32 %v141, %v150
  %v163 = vmul.f32 %v141, %v151
  %v164 = vadd.f32 %v115, %v152
  %v165 = vadd.f32 %v116, %v153
  %v166 = vadd.f32 %v117, %v154
  %v167 = vadd.f32 %v118, %v155
  %v168 = vadd.f32 %v119, %v156
  %v169 = vadd.f32 %v120, %v157
  %v170 = vadd.f32 %v121, %v158
  %v171 = vadd.f32 %v122, %v159
  %v172 = vadd.f32 %v123, %v160
  %v173 = vadd.f32 %v124, %v161
  %v174 = vadd.f32 %v125, %v162
  %v175 = vadd.f32 %v126, %v163
  %v176 = vld [vmem:[%s2] sm:$0xff]
  %v177 = vld [vmem:[%s2 + $0x8] sm:$0xff]
  %v178 = vld [vmem:[%s2 + $0x10] sm:$0xff]
  %v179 = vld [vmem:[%s2 + $0x18] sm:$0xff]
  %181 = vset.pattern.permute.xlu0 0
  %182 = vperm.xlu0 %181, %v176
  %v183 = vpop.permute.xlu0 %182
  %186 = vset.pattern.permute.xlu0 0
  %187 = vperm.xlu0 %186, %v177
  %v188 = vpop.permute.xlu0 %187
  %191 = vset.pattern.permute.xlu0 0
  %192 = vperm.xlu0 %191, %v178
  %v193 = vpop.permute.xlu0 %192
  %196 = vset.pattern.permute.xlu0 0
  %197 = vperm.xlu0 %196, %v179
  %v198 = vpop.permute.xlu0 %197
  %v200 = vadd.f32 %v164, %v183
  %v201 = vadd.f32 %v165, %v183
  %v202 = vadd.f32 %v166, %v183
  %v203 = vadd.f32 %v167, %v188
  %v204 = vadd.f32 %v168, %v188
  %v205 = vadd.f32 %v169, %v188
  %v206 = vadd.f32 %v170, %v193
  %v207 = vadd.f32 %v171, %v193
  %v208 = vadd.f32 %v172, %v193
  %v209 = vadd.f32 %v173, %v198
  %v210 = vadd.f32 %v174, %v198
  %v211 = vadd.f32 %v175, %v198
  %v212 = vmax.f32 %v200, 0.0
  %v213 = vmax.f32 %v201, 0.0
  %v214 = vmax.f32 %v202, 0.0
  %v215 = vmax.f32 %v203, 0.0
  %v216 = vmax.f32 %v204, 0.0
  %v217 = vmax.f32 %v205, 0.0
  %v218 = vmax.f32 %v206, 0.0
  %v219 = vmax.f32 %v207, 0.0
  %v220 = vmax.f32 %v208, 0.0
  %v221 = vmax.f32 %v209, 0.0
  %v222 = vmax.f32 %v210, 0.0
  %v223 = vmax.f32 %v211, 0.0
  %v224 = vld [vmem:[%s3] sm:$0xf]
  %v225 = vld [vmem:[%s3 + $0x4] sm:$0xf]
  %v226 = vld [vmem:[%s3 + $0x8] sm:$0xf]
  %v227 = vld [vmem:[%s3 + $0xc] sm:$0xf]
  %v228 = vpack.c.bf16 %v215, %v212
  %v229 = vpack.c.bf16 %v216, %v213
  %v230 = vpack.c.bf16 %v217, %v214
  %v231 = vpack.c.bf16 %v221, %v218
  %v232 = vpack.c.bf16 %v222, %v219
  %v233 = vpack.c.bf16 %v223, %v220
  %v234 = vld [vmem:[%s4] sm:$0xff]
  %v235 = vld [vmem:[%s4 + $0x8] sm:$0xff]
  %v236 = vld [vmem:[%s4 + $0x10] sm:$0xff]
  %v237 = vld [vmem:[%s4 + $0x18] sm:$0xff]
  %239 = vset.pattern.permute.xlu0 0
  %240 = vperm.xlu0 %239, %v234
  %v241 = vpop.permute.xlu0 %240
  %244 = vset.pattern.permute.xlu0 0
  %245 = vperm.xlu0 %244, %v235
  %v246 = vpop.permute.xlu0 %245
  %249 = vset.pattern.permute.xlu0 0
  %250 = vperm.xlu0 %249, %v236
  %v251 = vpop.permute.xlu0 %250
  %254 = vset.pattern.permute.xlu0 0
  %255 = vperm.xlu0 %254, %v237
  %v256 = vpop.permute.xlu0 %255
  %v262 = vunpack.c.l.b16 %v224
  %v263 = vunpack.c.l.b16 %v225
  %v264 = vunpack.c.l.b16 %v226
  %v265 = vunpack.c.l.b16 %v227
  %v266 = vpack.c.b16 %v263, %v262
  %v267 = vpack.c.b16 %v265, %v264
  %vm268 = vcmask 261120
  %v270 = vsel %vm268, %v266, 0
  %v273 = vsel %vm268, %v267, 0
  %275 = vmatpush.bf16.msra.mxu0 0
  %276 = vmatpush.bf16.msra.mxu0 0
  %277 = vmatpush.bf16.msra.mxu0 0
  %278 = vmatpush.bf16.msra.mxu0 0
  %279 = vmatpush.bf16.msra.mxu0 0
  %280 = vmatpush.bf16.msra.mxu0 0
  %281 = vmatpush.bf16.msra.mxu0 %v231
  %282 = vmatpush.bf16.msra.mxu0 %v228
  %283 = vmatmul.bf16.gmra.mxu0 %v270
  %v284 = vpop.f32.mrf.mxu0
  %v285 = vadd.f32 %v241, %v284
  %v286 = vpop.f32.mrf.mxu0
  %v287 = vadd.f32 %v246, %v286
  %288 = vmatmul.bf16.gmra.mxu0 %v273
  %v289 = vpop.f32.mrf.mxu0
  %v290 = vadd.f32 %v251, %v289
  %v291 = vpop.f32.mrf.mxu0
  %v292 = vadd.f32 %v256, %v291
  %293 = vdwg.mxu0
  %294 = vmatpush.bf16.msra.mxu0 0
  %295 = vmatpush.bf16.msra.mxu0 0
  %296 = vmatpush.bf16.msra.mxu0 0
  %297 = vmatpush.bf16.msra.mxu0 0
  %298 = vmatpush.bf16.msra.mxu0 0
  %299 = vmatpush.bf16.msra.mxu0 0
  %300 = vmatpush.bf16.msra.mxu0 %v232
  %301 = vmatpush.bf16.msra.mxu0 %v229
  %302 = vmatmul.bf16.gmra.mxu0 %v270
  %v303 = vpop.f32.mrf.mxu0
  %v304 = vadd.f32 %v241, %v303
  %v305 = vpop.f32.mrf.mxu0
  %v306 = vadd.f32 %v246, %v305
  %307 = vmatmul.bf16.gmra.mxu0 %v273
  %v308 = vpop.f32.mrf.mxu0
  %v309 = vadd.f32 %v251, %v308
  %v310 = vpop.f32.mrf.mxu0
  %v311 = vadd.f32 %v256, %v310
  %312 = vdwg.mxu0
  %313 = vmatpush.bf16.msra.mxu0 0
  %314 = vmatpush.bf16.msra.mxu0 0
  %315 = vmatpush.bf16.msra.mxu0 0
  %316 = vmatpush.bf16.msra.mxu0 0
  %317 = vmatpush.bf16.msra.mxu0 0
  %318 = vmatpush.bf16.msra.mxu0 0
  %319 = vmatpush.bf16.msra.mxu0 %v233
  %320 = vmatpush.bf16.msra.mxu0 %v230
  %321 = vmatmul.bf16.gmra.mxu0 %v270
  %v322 = vpop.f32.mrf.mxu0
  %v323 = vadd.f32 %v241, %v322
  %v324 = vpop.f32.mrf.mxu0
  %v325 = vadd.f32 %v246, %v324
  %326 = vmatmul.bf16.gmra.mxu0 %v273
  %v327 = vpop.f32.mrf.mxu0
  %v328 = vadd.f32 %v251, %v327
  %v329 = vpop.f32.mrf.mxu0
  %v330 = vadd.f32 %v256, %v329
  %331 = vdwg.mxu0
  %v332 = vmax.f32 %v285, 0.0
  %v333 = vmax.f32 %v304, 0.0
  %v334 = vmax.f32 %v323, 0.0
  %v335 = vmax.f32 %v287, 0.0
  %v336 = vmax.f32 %v306, 0.0
  %v337 = vmax.f32 %v325, 0.0
  %v338 = vmax.f32 %v290, 0.0
  %v339 = vmax.f32 %v309, 0.0
  %v340 = vmax.f32 %v328, 0.0
  %v341 = vmax.f32 %v292, 0.0
  %v342 = vmax.f32 %v311, 0.0
  %v343 = vmax.f32 %v330, 0.0
  %v344 = vld [vmem:[%s5] sm:$0xff]
  %v345 = vld [vmem:[%s5 + $0x8] sm:$0xff]
  %v346 = vld [vmem:[%s5 + $0x10] sm:$0xff]
  %v347 = vld [vmem:[%s5 + $0x18] sm:$0xff]
  %349 = vset.pattern.permute.xlu0 0
  %350 = vperm.xlu0 %349, %v344
  %v351 = vpop.permute.xlu0 %350
  %354 = vset.pattern.permute.xlu0 0
  %355 = vperm.xlu0 %354, %v345
  %v356 = vpop.permute.xlu0 %355
  %359 = vset.pattern.permute.xlu0 0
  %360 = vperm.xlu0 %359, %v346
  %v361 = vpop.permute.xlu0 %360
  %364 = vset.pattern.permute.xlu0 0
  %365 = vperm.xlu0 %364, %v347
  %v366 = vpop.permute.xlu0 %365
  %v368 = vmul.f32 %v351, %v332
  %v369 = vmul.f32 %v351, %v333
  %v370 = vmul.f32 %v351, %v334
  %v371 = vmul.f32 %v356, %v335
  %v372 = vmul.f32 %v356, %v336
  %v373 = vmul.f32 %v356, %v337
  %v374 = vmul.f32 %v361, %v338
  %v375 = vmul.f32 %v361, %v339
  %v376 = vmul.f32 %v361, %v340
  %v377 = vmul.f32 %v366, %v341
  %v378 = vmul.f32 %v366, %v342
  %v379 = vmul.f32 %v366, %v343
  %v380 = vadd.f32 %v368, %v371
  %v381 = vadd.f32 %v380, %v374
  %v382 = vadd.f32 %v381, %v377
  %v383 = vrot.slane %v382, 4
  %v384 = vadd.f32 %v382, %v383
  %v385 = vrot.slane %v384, 2
  %v386 = vadd.f32 %v384, %v385
  %v387 = vrot.slane %v386, 1
  %v388 = vadd.f32 %v386, %v387
  %v389 = vadd.f32 %v369, %v372
  %v390 = vadd.f32 %v389, %v375
  %v391 = vadd.f32 %v390, %v378
  %v392 = vrot.slane %v391, 4
  %v393 = vadd.f32 %v391, %v392
  %v394 = vrot.slane %v393, 2
  %v395 = vadd.f32 %v393, %v394
  %v396 = vrot.slane %v395, 1
  %v397 = vadd.f32 %v395, %v396
  %v398 = vadd.f32 %v370, %v373
  %v399 = vadd.f32 %v398, %v376
  %v400 = vadd.f32 %v399, %v379
  %v401 = vrot.slane %v400, 4
  %v402 = vadd.f32 %v400, %v401
  %v403 = vrot.slane %v402, 2
  %v404 = vadd.f32 %v402, %v403
  %v405 = vrot.slane %v404, 1
  %v406 = vadd.f32 %v404, %v405
  %v407 = vld [vmem:[#allocation2] sm:$0x1]
  %409 = vset.pattern.permute.xlu0 0
  %410 = vperm.xlu0 %409, %v407
  %v411 = vpop.permute.xlu0 %410
  %v413 = vperm.slane %v411, 0
  %v414 = vadd.f32 %v388, %v413
  %v415 = vadd.f32 %v397, %v413
  %v416 = vadd.f32 %v406, %v413
  %v420 = vrot.slane %v415, 7
  %v421 = vrot.slane %v416, 6
  %vm422 = vcmask 1040384
  %v423 = vsel %vm422, %v414, %v420
  %vm424 = vcmask 1041408
  %v425 = vsel %vm424, %v423, %v421
  %v427 = vlaneseq
  %vm428 = vcmp.ge.s32.totalorder %v427, 0
  %vm429 = vcmp.lt.s32.totalorder %v427, 384
  %vm430 = vmand %vm428, %vm429
  %431 = vst.msk [vmem:[%s7] sm:$0x7] %vm430, %v425
  // Predicated region
  $region30: #{value_forward.1} parent=0 // pred_check
    _
  $region31: #{value_forward.1} parent=0 // pred_check_branch
    %433 = sbr.rel (0) target = $region33
  $region32: #{value_forward.1} parent=0 // pred_region
    _
  $region33: #{value_forward.1} parent=0 // pred_fallthru
    _
  // Predicated region
  $region34: #{value_forward.1} parent=0 // pred_check
    _
  $region35: #{value_forward.1} parent=0 // pred_check_branch
    %435 = sbr.rel (0) target = $region37
  $region36: #{value_forward.1} parent=0 // pred_region
    _
  $region37: #{value_forward.1} parent=0 // pred_fallthru
    _

</llo_original>
